<compile_context>
chip_gen: v6e
topology: v6e:2x2x1
jax: 0.10.0
libtpu: 0.0.40
codegen_flags: <defaults>
</compile_context>

<pallas_src>
import functools

import jax
import jax.numpy as jnp
from jax.experimental import pallas as pl
from jax.experimental.pallas import tpu as pltpu


def _round_up(x, m):
    return ((x + m - 1) // m) * m


def _cdiv(a, b):
    return (a + b - 1) // b


def _num_tensorcores_per_chip():
    """Heuristic: TensorCores exposed per JAX device (megacore chips -> 2)."""
    try:
        kind = jax.devices()[0].device_kind.lower()
    except Exception:
        return 1
    return 2 if any(tag in kind for tag in ("v4", "v5p", "v7", "7x")) else 1


def rpe_constants(patch_size):
    pos_bnd = int((4 * patch_size) ** (1 / 3) * 2)
    rpe_num = 2 * pos_bnd + 1
    return pos_bnd, rpe_num


def rpe_prepare_table(rpe_table, *, patch_size, num_heads):
    """rpe_table (3*rpe_num, H) -> banded transposed table (H_pad, 3*band) f32.

    Each axis' rpe_num-row slice is re-strided to an 8-aligned `band`-row stripe so
    the kernel can build the one-hot band-by-band (one compare per band, no ORs).
    Do this once per parameter, outside the hot path.
    """
    _, rpe_num = rpe_constants(patch_size)
    rows = 3 * rpe_num
    assert rpe_table.shape == (rows, num_heads)
    band = _round_up(rpe_num, 8)
    h_pad = _round_up(num_heads, 8)
    tt = jnp.transpose(rpe_table.astype(jnp.float32))            # (H, 3*rpe_num)
    table_t = jnp.zeros((h_pad, 3 * band), jnp.float32)
    for a in range(3):
        table_t = table_t.at[:num_heads, a * band:a * band + rpe_num].set(
            tt[:, a * rpe_num:(a + 1) * rpe_num])
    return table_t


def _rpe_kernel(coord_ref, table_ref, iota_ref, out_ref, onehot_ref, *, pos_bnd, band):
    # coord_ref : (3, TR)         int32  relative coords, xyz on sublanes, rows lane-dense
    # table_ref : (H_pad, 3*band) f32    banded transposed table, fully VMEM-resident
    # iota_ref  : (band, TR)      int32  grid-invariant band-local row iota (hoisted input)
    # out_ref   : (H_pad, TR)     f32    lane-dense transposed output block
    # onehot_ref: (3*band, TR)    f32    scratch one-hot, built band-by-band
    c = jnp.clip(coord_ref[...], -pos_bnd, pos_bnd) + pos_bnd     # (3, TR) in [0, 2*pos_bnd]
    iota = iota_ref[...]                                          # (band, TR) rows 0..band-1

    # Band-local compares: the xyz bands are disjoint 8-aligned stripes, so one
    # compare per band suffices (no ORs, no full-height iota).
    onehot_ref[0 * band:1 * band, :] = (iota == c[0:1, :]).astype(jnp.float32)
    onehot_ref[1 * band:2 * band, :] = (iota == c[1:2, :]).astype(jnp.float32)
    onehot_ref[2 * band:3 * band, :] = (iota == c[2:3, :]).astype(jnp.float32)

    # Fused gather + sum over the 3 axes on the MXU; lane-dense output stores.
    # TODO(synk): a bf16 table + bf16 one-hot path would halve one-hot VMEM traffic
    # (helps v5e's single vst slot) at ~1e-4 abs error; kept f32 for exactness.
    out_ref[...] = jnp.dot(table_ref[...], onehot_ref[...],
                           preferred_element_type=jnp.float32)    # (H_pad, TR)


def rpe_forward_lanes(coord_t, table_t, *, patch_size, tile_rows=8192):
    """Lane-dense core: coord_t (3, M) int -> out_t (H_pad, M) f32.

    Prefer this entry for large M and consume the (H_pad, M) slab directly (fuse the
    final permute into the attention-bias add) to avoid extra wrapper HBM passes.
    """
    pos_bnd, rpe_num = rpe_constants(patch_size)
    band = _round_up(rpe_num, 8)
    h_pad, r_pad = table_t.shape
    assert r_pad == 3 * band
    three, m = coord_t.shape
    assert three == 3

    # Tile selection: lane-dense multiple of 128, large (amortizes ~0.35us/step),
    # never over-padding tiny inputs.  The ">= num_tc steps" cap is applied only on
    # megacore chips; on single-TC v5e/v6e the grid is serial and bigger is better.
    t = max(128, _round_up(int(tile_rows), 128))
    t = min(t, max(128, _round_up(m, 128)))
    num_tc = _num_tensorcores_per_chip()
    if num_tc > 1 and m > 128 * num_tc:
        t = min(t, max(128, _round_up(_cdiv(m, num_tc), 128)))
    m_pad = _round_up(m, t)

    coord_p = coord_t.astype(jnp.int32)
    if m_pad != m:
        coord_p = jnp.pad(coord_p, ((0, 0), (0, m_pad - m)))

    # Grid-invariant band iota passed as an input with a constant index_map: DMA'd
    # once per core, then kept VMEM-resident (megacore-safe hoist).
    band_iota = jnp.broadcast_to(jnp.arange(band, dtype=jnp.int32)[:, None], (band, t))

    grid = (m_pad // t,)
    out_t = pl.pallas_call(
        functools.partial(_rpe_kernel, pos_bnd=pos_bnd, band=band),
        out_shape=jax.ShapeDtypeStruct((h_pad, m_pad), jnp.float32),
        grid_spec=pltpu.PrefetchScalarGridSpec(
            num_scalar_prefetch=0,
            grid=grid,
            in_specs=[
                pl.BlockSpec((3, t), lambda i: (0, i)),
                pl.BlockSpec((h_pad, r_pad), lambda i: (0, 0)),
                pl.BlockSpec((band, t), lambda i: (0, 0)),
            ],
            out_specs=pl.BlockSpec((h_pad, t), lambda i: (0, i)),
            scratch_shapes=[pltpu.VMEM((3 * band, t), jnp.float32)],
        ),
        compiler_params=pltpu.CompilerParams(
            # "parallel" lets the runtime shard the row axis across TensorCores on
            # megacore chips; if profiling on v7x shows a single core in use,
            # switch this axis to pltpu.CORE_PARALLEL.
            dimension_semantics=("parallel",)),
    )(coord_p, table_t, band_iota)
    return out_t[:, :m] if m_pad != m else out_t


def rpe_forward(coord, rpe_table, *, patch_size, num_heads, tile_rows=8192):
    """PyTorch-compatible wrapper: coord (N, K, K, 3) int -> (N, num_heads, K, K) f32.

    TODO(synk): the coord transpose and the final (H, M)->(N, H, K, K) permute are
    pure layout passes over HBM; for large M feed coord as (3, M) and consume the
    lane-dense (H, M) slab from rpe_forward_lanes directly in the consumer instead.
    """
    n, k1, k2, three = coord.shape
    assert three == 3
    m = n * k1 * k2
    table_t = rpe_prepare_table(rpe_table, patch_size=patch_size, num_heads=num_heads)
    coord_t = jnp.transpose(coord.reshape(m, 3).astype(jnp.int32), (1, 0))
    out_t = rpe_forward_lanes(coord_t, table_t, patch_size=patch_size, tile_rows=tile_rows)
    out = out_t[:num_heads].reshape(num_heads, n, k1, k2)
    return jnp.transpose(out, (1, 0, 2, 3))


def rpe_reference(coord, rpe_table, *, patch_size, num_heads):
    """Pure-JAX reference mirroring the PyTorch forward exactly."""
    pos_bnd, rpe_num = rpe_constants(patch_size)
    idx = (jnp.clip(coord, -pos_bnd, pos_bnd) + pos_bnd
           + jnp.arange(3, dtype=jnp.int32) * rpe_num)          # (N, K, K, 3)
    out = rpe_table[idx.reshape(-1)]                            # (N*K*K*3, H)
    out = out.reshape(idx.shape + (num_heads,)).sum(3)          # (N, K, K, H)
    return jnp.transpose(out, (0, 3, 1, 2))                     # (N, H, K, K)


if __name__ == "__main__":
    patch_size = 48
    num_heads = 8
    _, rpe_num = rpe_constants(patch_size)                      # pos_bnd=11, rpe_num=23

    key = jax.random.PRNGKey(0)
    k_tab, k_coord = jax.random.split(key)

    # Deterministic trunc_normal(std=0.02) init: truncation bounds +/-2 are ~100 sigma,
    # so a plain normal * 0.02 is numerically equivalent.
    rpe_table = 0.02 * jax.random.normal(k_tab, (3 * rpe_num, num_heads), jnp.float32)

    # Small relative-coordinate input (N, K, K, 3); range wide enough to hit the clamp.
    n, k = 2, 8
    coord = jax.random.randint(k_coord, (n, k, k, 3), -16, 17, dtype=jnp.int32)

    fwd = jax.jit(functools.partial(rpe_forward, patch_size=patch_size, num_heads=num_heads))
    out = jax.block_until_ready(fwd(coord, rpe_table))

    ref = rpe_reference(coord, rpe_table, patch_size=patch_size, num_heads=num_heads)
    assert out.shape == (n, num_heads, k, k), out.shape
    assert jnp.allclose(out, ref, atol=1e-5, rtol=1e-5), float(jnp.abs(out - ref).max())

    print("KERNEL_OK")
</pallas_src>

<mosaic_0001>
module attributes {stable_mosaic.version = 11 : i64} {
  func.func @_rpe_kernel(%arg0: i32, %arg1: memref<3x128xi32, #tpu.memory_space<vmem>>, %arg2: memref<8x72xf32, #tpu.memory_space<vmem>>, %arg3: memref<24x128xi32, #tpu.memory_space<vmem>>, %arg4: memref<8x128xf32, #tpu.memory_space<vmem>>, %arg5: memref<72x128xf32, #tpu.memory_space<vmem>>) attributes {dimension_semantics = [#tpu.dimension_semantics<parallel>], iteration_bounds = array<i64: 1>, scalar_prefetch = 0 : i64, scratch_operands = 1 : i64, tpu.core_type = #tpu.core_type<tc>, window_params = [{transform_indices = @transform_0, window_bounds = array<i64: 3, 128>}, {pipeline_mode = #tpu.pipeline_mode<synchronous>, transform_indices = @transform_1, window_bounds = array<i64: 8, 72>}, {pipeline_mode = #tpu.pipeline_mode<synchronous>, transform_indices = @transform_2, window_bounds = array<i64: 24, 128>}, {transform_indices = @transform_3, window_bounds = array<i64: 8, 128>}]} {
    %c0 = arith.constant 0 : index
    %c0_0 = arith.constant 0 : index
    %0 = vector.load %arg1[%c0, %c0_0] : memref<3x128xi32, #tpu.memory_space<vmem>>, vector<3x128xi32>
    %c-11_i32 = arith.constant -11 : i32
    %c11_i32 = arith.constant 11 : i32
    %1 = vector.broadcast %c-11_i32 : i32 to vector<3x128xi32>
    %2 = arith.maxsi %1, %0 : vector<3x128xi32>
    %3 = vector.broadcast %c11_i32 : i32 to vector<3x128xi32>
    %4 = arith.minsi %3, %2 : vector<3x128xi32>
    %c11_i32_1 = arith.constant 11 : i32
    %5 = vector.broadcast %c11_i32_1 : i32 to vector<3x128xi32>
    %6 = arith.addi %4, %5 : vector<3x128xi32>
    %c0_2 = arith.constant 0 : index
    %c0_3 = arith.constant 0 : index
    %7 = vector.load %arg3[%c0_2, %c0_3] : memref<24x128xi32, #tpu.memory_space<vmem>>, vector<24x128xi32>
    %8 = vector.extract_strided_slice %6 {offsets = [0, 0], sizes = [1, 128], strides = [1, 1]} : vector<3x128xi32> to vector<1x128xi32>
    %9 = vector.broadcast %8 : vector<1x128xi32> to vector<24x128xi32>
    %10 = arith.cmpi eq, %7, %9 : vector<24x128xi32>
    %11 = arith.extui %10 : vector<24x128xi1> to vector<24x128xi32>
    %12 = arith.sitofp %11 : vector<24x128xi32> to vector<24x128xf32>
    %c0_4 = arith.constant 0 : index
    %c0_5 = arith.constant 0 : index
    %13 = vector.load %arg5[%c0_4, %c0_5] : memref<72x128xf32, #tpu.memory_space<vmem>>, vector<24x128xf32>
    tpu.vector_store %arg5[%c0_4, %c0_5], %12 {strides = array<i32>} : memref<72x128xf32, #tpu.memory_space<vmem>>, vector<24x128xf32>,
    %14 = vector.extract_strided_slice %6 {offsets = [1, 0], sizes = [1, 128], strides = [1, 1]} : vector<3x128xi32> to vector<1x128xi32>
    %15 = vector.broadcast %14 : vector<1x128xi32> to vector<24x128xi32>
    %16 = arith.cmpi eq, %7, %15 : vector<24x128xi32>
    %17 = arith.extui %16 : vector<24x128xi1> to vector<24x128xi32>
    %18 = arith.sitofp %17 : vector<24x128xi32> to vector<24x128xf32>
    %c24 = arith.constant 24 : index
    %c0_6 = arith.constant 0 : index
    %19 = vector.load %arg5[%c24, %c0_6] : memref<72x128xf32, #tpu.memory_space<vmem>>, vector<24x128xf32>
    tpu.vector_store %arg5[%c24, %c0_6], %18 {strides = array<i32>} : memref<72x128xf32, #tpu.memory_space<vmem>>, vector<24x128xf32>,
    %20 = vector.extract_strided_slice %6 {offsets = [2, 0], sizes = [1, 128], strides = [1, 1]} : vector<3x128xi32> to vector<1x128xi32>
    %21 = vector.broadcast %20 : vector<1x128xi32> to vector<24x128xi32>
    %22 = arith.cmpi eq, %7, %21 : vector<24x128xi32>
    %23 = arith.extui %22 : vector<24x128xi1> to vector<24x128xi32>
    %24 = arith.sitofp %23 : vector<24x128xi32> to vector<24x128xf32>
    %c48 = arith.constant 48 : index
    %c0_7 = arith.constant 0 : index
    %25 = vector.load %arg5[%c48, %c0_7] : memref<72x128xf32, #tpu.memory_space<vmem>>, vector<24x128xf32>
    tpu.vector_store %arg5[%c48, %c0_7], %24 {strides = array<i32>} : memref<72x128xf32, #tpu.memory_space<vmem>>, vector<24x128xf32>,
    %c0_8 = arith.constant 0 : index
    %c0_9 = arith.constant 0 : index
    %26 = vector.load %arg2[%c0_8, %c0_9] : memref<8x72xf32, #tpu.memory_space<vmem>>, vector<8x72xf32>
    %c0_10 = arith.constant 0 : index
    %c0_11 = arith.constant 0 : index
    %27 = vector.load %arg5[%c0_10, %c0_11] : memref<72x128xf32, #tpu.memory_space<vmem>>, vector<72x128xf32>
    %cst = arith.constant dense<0.000000e+00> : vector<8x128xf32>
    %28 = tpu.matmul %26, %27, %cst {dimension_numbers = #tpu.dot_dimension_numbers<[1], [0], [0], [1], [0, 0, 1, 1], [], []>} : vector<8x72xf32>, vector<72x128xf32>, vector<8x128xf32> -> vector<8x128xf32>
    %c0_12 = arith.constant 0 : index
    %c0_13 = arith.constant 0 : index
    %29 = vector.load %arg4[%c0_12, %c0_13] : memref<8x128xf32, #tpu.memory_space<vmem>>, vector<8x128xf32>
    tpu.vector_store %arg4[%c0_12, %c0_13], %28 {strides = array<i32>} : memref<8x128xf32, #tpu.memory_space<vmem>>, vector<8x128xf32>,
    return
  }
  func.func @transform_0(%arg0: i32) -> (i32, i32) {
    %c0_i32 = arith.constant 0 : i32
    %c0_i32_0 = arith.constant 0 : i32
    return %c0_i32, %arg0 : i32, i32
  }
  func.func @transform_1(%arg0: i32) -> (i32, i32) {
    %c0_i32 = arith.constant 0 : i32
    %c0_i32_0 = arith.constant 0 : i32
    %c0_i32_1 = arith.constant 0 : i32
    return %c0_i32, %c0_i32_0 : i32, i32
  }
  func.func @transform_2(%arg0: i32) -> (i32, i32) {
    %c0_i32 = arith.constant 0 : i32
    %c0_i32_0 = arith.constant 0 : i32
    %c0_i32_1 = arith.constant 0 : i32
    return %c0_i32, %c0_i32_0 : i32, i32
  }
  func.func @transform_3(%arg0: i32) -> (i32, i32) {
    %c0_i32 = arith.constant 0 : i32
    %c0_i32_0 = arith.constant 0 : i32
    return %c0_i32, %arg0 : i32, i32
  }
}

</mosaic_0001>

<llo_original>
// kernel: rpe_forward.1
$region0: #{rpe_forward.1}
  #allocation0 [shape = 'u32[]', space=smem, size = 0x4, offset = 0x4, fixed_abs, tag = 'smem constant byte address 0x4 - core index']
  #allocation1 [shape = 'u32[144,128]{1,0:T(1,128)}', space=vmem, size = 0x12000, scoped, tag = 'internal scratch']
  #allocation2 [shape = 'f32[72,128]{1,0:T(8,128)}', space=vmem, size = 0x9000, scoped, tag = 'scratch operand']
  %s0 = inlined_call_operand.vmem [shape: s32[3,128], index: 0, kind: input, shape index: {}]
  %s1 = inlined_call_operand.vmem [shape: f32[8,72], index: 1, kind: input, shape index: {}]
  %s2 = inlined_call_operand.vmem [shape: s32[24,128], index: 2, kind: input, shape index: {}]
  %s3 = inlined_call_operand.vmem [shape: f32[8,128], index: 3, kind: output, shape index: {}]
  %s4 = sld [smem:[#allocation0]]
  $region22: #{rpe_forward.1} parent=0
    _
  %s6 = ssub.s32 1, %s4
  %s7 = scalar_select 0, %s6, %s4
  // Predicated region
  $region2: #{rpe_forward.1} parent=0 // pred_check
    _
  $region3: #{rpe_forward.1} parent=0 // pred_check_branch
    %9 = sbr.rel (0) target = $region5
  $region4: #{rpe_forward.1} parent=0 // pred_region
    _
  $region5: #{rpe_forward.1} parent=0 // pred_fallthru
    _
  // Predicated region
  $region6: #{rpe_forward.1} parent=0 // pred_check
    _
  $region7: #{rpe_forward.1} parent=0 // pred_check_branch
    %11 = sbr.rel (0) target = $region9
  $region8: #{rpe_forward.1} parent=0 // pred_region
    _
  $region9: #{rpe_forward.1} parent=0 // pred_fallthru
    _
  // Predicated region
  $region10: #{rpe_forward.1} parent=0 // pred_check
    _
  $region11: #{rpe_forward.1} parent=0 // pred_check_branch
    %13 = sbr.rel (0) target = $region13
  $region12: #{rpe_forward.1} parent=0 // pred_region
    _
  $region13: #{rpe_forward.1} parent=0 // pred_fallthru
    _
  %v14 = vld [vmem:[%s0] sm:$0x7]
  %vm15 = vcmp.gt.s32.totalorder %v14, 4294967285
  %v16 = vsel %vm15, %v14, 4294967285
  %vm17 = vcmp.lt.s32.totalorder %v16, 11
  %v18 = vsel %vm17, %v16, 11
  %v19 = vadd.s32 %v18, 11
  %v20 = vld [vmem:[%s2] sm:$0xff]
  %v21 = vld [vmem:[%s2 + $0x8] sm:$0xff]
  %v22 = vld [vmem:[%s2 + $0x10] sm:$0xff]
  %v23 = vlaneseq
  %v24 = vshrl.u32 %v23, 7
  %v25 = vsub.s32 0, %v24
  %v26 = vrot.slane %v19, %v25
  %vm27 = vcmp.eq.s32.totalorder %v20, %v26
  %vm28 = vcmp.eq.s32.totalorder %v21, %v26
  %vm29 = vcmp.eq.s32.totalorder %v22, %v26
  %v30 = vsel %vm27, 1, 0
  %v31 = vsel %vm28, 1, 0
  %v32 = vsel %vm29, 1, 0
  %v33 = vcvt.s32.f32 %v30
  %v34 = vcvt.s32.f32 %v31
  %v35 = vcvt.s32.f32 %v32
  %36 = vst [vmem:[#allocation2] sm:$0xff] %v33
  %37 = vst [vmem:[#allocation2 + $0x8] sm:$0xff] %v34
  %38 = vst [vmem:[#allocation2 + $0x10] sm:$0xff] %v35
  %v39 = vlaneseq
  %v40 = vshrl.u32 %v39, 7
  %v41 = vsub.s32 1, %v40
  %v42 = vrot.slane %v19, %v41
  %vm43 = vcmp.eq.s32.totalorder %v20, %v42
  %vm44 = vcmp.eq.s32.totalorder %v21, %v42
  %vm45 = vcmp.eq.s32.totalorder %v22, %v42
  %v46 = vsel %vm43, 1, 0
  %v47 = vsel %vm44, 1, 0
  %v48 = vsel %vm45, 1, 0
  %v49 = vcvt.s32.f32 %v46
  %v50 = vcvt.s32.f32 %v47
  %v51 = vcvt.s32.f32 %v48
  %52 = vst [vmem:[#allocation2 + $0x18] sm:$0xff] %v49
  %53 = vst [vmem:[#allocation2 + $0x20] sm:$0xff] %v50
  %54 = vst [vmem:[#allocation2 + $0x28] sm:$0xff] %v51
  %v55 = vlaneseq
  %v56 = vshrl.u32 %v55, 7
  %v57 = vsub.s32 2, %v56
  %v58 = vrot.slane %v19, %v57
  %vm59 = vcmp.eq.s32.totalorder %v20, %v58
  %vm60 = vcmp.eq.s32.totalorder %v21, %v58
  %vm61 = vcmp.eq.s32.totalorder %v22, %v58
  %v62 = vsel %vm59, 1, 0
  %v63 = vsel %vm60, 1, 0
  %v64 = vsel %vm61, 1, 0
  %v65 = vcvt.s32.f32 %v62
  %v66 = vcvt.s32.f32 %v63
  %v67 = vcvt.s32.f32 %v64
  %68 = vst [vmem:[#allocation2 + $0x30] sm:$0xff] %v65
  %69 = vst [vmem:[#allocation2 + $0x38] sm:$0xff] %v66
  %70 = vst [vmem:[#allocation2 + $0x40] sm:$0xff] %v67
  %v71 = vld [vmem:[%s1] sm:$0xff]
  %v72 = vld [vmem:[#allocation2] sm:$0xff]
  %v73 = vld [vmem:[#allocation2 + $0x8] sm:$0xff]
  %v74 = vld [vmem:[#allocation2 + $0x10] sm:$0xff]
  %v75 = vld [vmem:[#allocation2 + $0x18] sm:$0xff]
  %v76 = vld [vmem:[#allocation2 + $0x20] sm:$0xff]
  %v77 = vld [vmem:[#allocation2 + $0x28] sm:$0xff]
  %v78 = vld [vmem:[#allocation2 + $0x30] sm:$0xff]
  %v79 = vld [vmem:[#allocation2 + $0x38] sm:$0xff]
  %v80 = vld [vmem:[#allocation2 + $0x40] sm:$0xff]
  %vm81 = vcmask 588800
  %v83 = vsel %vm81, %v71, 0
  %85 = vmatprep.subr.mxu0 0.0
  %86 = vmatpush1.msra.mxu0 0.0
  %87 = vmatprep.subr.mxu0 0.0
  %88 = vmatpush1.msra.mxu0 0.0
  %89 = vmatprep.subr.mxu0 0.0
  %90 = vmatpush1.msra.mxu0 0.0
  %91 = vmatprep.subr.mxu0 0.0
  %92 = vmatpush1.msra.mxu0 0.0
  %93 = vmatprep.subr.mxu0 0.0
  %94 = vmatpush1.msra.mxu0 0.0
  %95 = vmatprep.subr.mxu0 0.0
  %96 = vmatpush1.msra.mxu0 0.0
  %97 = vmatprep.subr.mxu0 0.0
  %98 = vmatpush1.msra.mxu0 0.0
  %99 = vmatprep.subr.mxu0 0.0
  %100 = vmatpush1.msra.mxu0 %v80
  %101 = vmatprep.subr.mxu0 0.0
  %102 = vmatpush1.msra.mxu0 %v79
  %103 = vmatprep.subr.mxu0 0.0
  %104 = vmatpush1.msra.mxu0 %v78
  %105 = vmatprep.subr.mxu0 0.0
  %106 = vmatpush1.msra.mxu0 %v77
  %107 = vmatprep.subr.mxu0 0.0
  %108 = vmatpush1.msra.mxu0 %v76
  %109 = vmatprep.subr.mxu0 0.0
  %110 = vmatpush1.msra.mxu0 %v75
  %111 = vmatprep.subr.mxu0 0.0
  %112 = vmatpush1.msra.mxu0 %v74
  %113 = vmatprep.subr.mxu0 0.0
  %114 = vmatpush1.msra.mxu0 %v73
  %115 = vmatprep.subr.mxu0 0.0
  %116 = vmatpush1.msra.mxu0 %v72
  %117 = vmatprep.subr.mxu0 0.0
  %118 = vmatpush2.msra.mxu0 0.0
  %119 = vmatprep.subr.mxu0 0.0
  %120 = vmatpush2.msra.mxu0 0.0
  %121 = vmatprep.subr.mxu0 0.0
  %122 = vmatpush2.msra.mxu0 0.0
  %123 = vmatprep.subr.mxu0 0.0
  %124 = vmatpush2.msra.mxu0 0.0
  %125 = vmatprep.subr.mxu0 0.0
  %126 = vmatpush2.msra.mxu0 0.0
  %127 = vmatprep.subr.mxu0 0.0
  %128 = vmatpush2.msra.mxu0 0.0
  %129 = vmatprep.subr.mxu0 0.0
  %130 = vmatpush2.msra.mxu0 0.0
  %131 = vmatprep.subr.mxu0 0.0
  %132 = vmatpush2.msra.mxu0 0.0
  %133 = vmatprep.subr.mxu0 0.0
  %134 = vmatpush2.msra.mxu0 0.0
  %135 = vmatprep.subr.mxu0 0.0
  %136 = vmatpush2.msra.mxu0 0.0
  %137 = vmatprep.subr.mxu0 0.0
  %138 = vmatpush2.msra.mxu0 0.0
  %139 = vmatprep.subr.mxu0 0.0
  %140 = vmatpush2.msra.mxu0 0.0
  %141 = vmatprep.subr.mxu0 0.0
  %142 = vmatpush2.msra.mxu0 0.0
  %143 = vmatprep.subr.mxu0 0.0
  %144 = vmatpush2.msra.mxu0 0.0
  %145 = vmatprep.subr.mxu0 0.0
  %146 = vmatpush2.msra.mxu0 0.0
  %147 = vmatprep.subr.mxu0 0.0
  %148 = vmatpush2.msra.mxu0 0.0
  %149 = vmatprep.mubr.f32.mxu0 0.0
  %150 = vmatmul.mubr.f32.gmra.mxu0 %v83
  %v151 = vpop.f32.mrf.mxu0
  %v152 = vadd.f32 0.0, %v151
  %v153 = vpop.f32.mrf.mxu0
  %154 = vdwg.mxu0
  %155 = vst [vmem:[%s3] sm:$0xff] %v152
  // Predicated region
  $region14: #{rpe_forward.1} parent=0 // pred_check
    _
  $region15: #{rpe_forward.1} parent=0 // pred_check_branch
    %157 = sbr.rel (0) target = $region17
  $region16: #{rpe_forward.1} parent=0 // pred_region
    _
  $region17: #{rpe_forward.1} parent=0 // pred_fallthru
    _
  // Predicated region
  $region18: #{rpe_forward.1} parent=0 // pred_check
    _
  $region19: #{rpe_forward.1} parent=0 // pred_check_branch
    %159 = sbr.rel (0) target = $region21
  $region20: #{rpe_forward.1} parent=0 // pred_region
    _
  $region21: #{rpe_forward.1} parent=0 // pred_fallthru
    _

</llo_original>
